<compile_context>
chip_gen: v5e
topology: v5e:2x2
jax: 0.10.0
libtpu: 0.0.40
codegen_flags: <defaults>
</compile_context>

<pallas_src>
import functools

import jax
import jax.numpy as jnp
from jax.experimental import pallas as pl
from jax.experimental.pallas import tpu as pltpu


def lstm_kernel(x_ref, wih_ref, whh_ref, b_ref, wlin_ref, blin_ref, y_ref,
                xw_ref, h_ref, *, T, Bp, H):
    """Single-invocation LSTM + Linear.

    x_ref    : (T*Bp, I)    time-major, batch padded to Bp (multiple of 8)
    wih_ref  : (I, 4H)      PyTorch W_ih transposed (gate order i,f,g,o)
    whh_ref  : (H, 4H)      PyTorch W_hh transposed
    b_ref    : (1, 4H)      b_ih + b_hh
    wlin_ref : (H, Op)      W_linear transposed, zero-padded to Op (mult. of 128)
    blin_ref : (1, Op)
    y_ref    : (T*Bp, Op)   lane-dense output slab
    xw_ref   : (T*Bp, 4H)   VMEM scratch: hoisted input projection
    h_ref    : (T*Bp, H)    VMEM scratch: per-step hidden states
    """
    # Hoisted input projection for ALL time steps at once (one MXU call); the
    # combined bias is folded in here so it is added exactly once.  Parked in
    # VMEM scratch so the recurrence runs at constant vreg pressure.
    xw_ref[...] = (jnp.dot(x_ref[...], wih_ref[...],
                           preferred_element_type=jnp.float32)
                   + b_ref[...])                              # (T*Bp, 4H)
    whh = whh_ref[...]                                        # (H, 4H)

    h = jnp.zeros((Bp, H), jnp.float32)
    c = jnp.zeros((Bp, H), jnp.float32)

    # T is small and static -> fully unrolled, straight-line code for the LLO
    # scheduler; only the (Bp,H)@(H,4H) matmul + 2 EUP passes sit on the serial
    # chain.  All starts below are static Python ints (aligned slices).
    for t in range(T):
        pre = xw_ref[pl.ds(t * Bp, Bp), :] + jnp.dot(
            h, whh, preferred_element_type=jnp.float32)       # (Bp, 4H)

        # Full-width activations: 2 EUP passes over the whole 128-lane vreg
        # (sigmoid via tanh: sigmoid(x) = 0.5*(tanh(x/2)+1)), then static
        # 32-lane gate slices.  Gate/cell elementwise math stays f32 (v5e-safe).
        sig = 0.5 * (jnp.tanh(0.5 * pre) + 1.0)               # i, f, o gates
        th = jnp.tanh(pre)                                    # g gate
        i_g = sig[:, 0 * H:1 * H]
        f_g = sig[:, 1 * H:2 * H]
        g_g = th[:, 2 * H:3 * H]
        o_g = sig[:, 3 * H:4 * H]

        c = f_g * c + i_g * g_g
        h = o_g * jnp.tanh(c)
        h_ref[pl.ds(t * Bp, Bp), :] = h                       # scratch slab write

    # Batched output projection + single unmasked lane-dense store.
    y_ref[...] = (jnp.dot(h_ref[...], wlin_ref[...],
                          preferred_element_type=jnp.float32)
                  + blin_ref[...]).astype(y_ref.dtype)

    # TODO(synk): hold whh in MXU staging registers across the unrolled loop
    # (pltpu.matmul_push_rhs / matmul_acc_lhs / matmul_pop) to avoid re-paying
    # the weight-push phase on each of the T tiny recurrent matmuls.


def lstm_model_forward(x, W_ih, W_hh, b_ih, b_hh, W_lin, b_lin):
    """x: (batch, seq, input_features) -> (batch, seq, output_steps)."""
    B, T, I = x.shape
    H = W_hh.shape[1]
    O = W_lin.shape[0]

    # Layout assumptions, asserted loudly instead of silently degrading:
    # fused gate matmul / gate slices need 4H to be a whole number of vregs.
    assert (4 * H) % 128 == 0, (
        f"hidden_dim={H}: 4*hidden_dim must be a multiple of 128 "
        "(pad gate columns in the wrapper to generalize)")

    Bp = ((B + 7) // 8) * 8                                   # sublane-group pad
    Op = ((O + 127) // 128) * 128                             # lane-dense output pad

    # Time-major, batch-padded, flattened to 2D so the kernel does pure matmuls.
    x_tm = jnp.swapaxes(x, 0, 1)                              # (T, B, I)
    x_tm = jnp.pad(x_tm, ((0, 0), (0, Bp - B), (0, 0)))
    x2d = x_tm.reshape(T * Bp, I).astype(jnp.float32)

    # Weight preprocessing (gate order i,f,g,o preserved from PyTorch layout).
    wih4 = W_ih.T.astype(jnp.float32)                         # (I, 4H)
    whh4 = W_hh.T.astype(jnp.float32)                         # (H, 4H)
    b4 = (b_ih + b_hh).reshape(1, 4 * H).astype(jnp.float32)
    # Zero-pad the linear head to a full 128-lane slab -> unmasked output store.
    wlin_t = jnp.zeros((H, Op), jnp.float32).at[:, :O].set(W_lin.T.astype(jnp.float32))
    blin = jnp.zeros((1, Op), jnp.float32).at[:, :O].set(b_lin.astype(jnp.float32))

    kernel = functools.partial(lstm_kernel, T=T, Bp=Bp, H=H)
    vmem = pl.BlockSpec(memory_space=pltpu.MemorySpace.VMEM)

    y2d = pl.pallas_call(
        kernel,
        out_shape=jax.ShapeDtypeStruct((T * Bp, Op), jnp.float32),
        in_specs=[vmem] * 6,                                  # everything VMEM-resident
        out_specs=vmem,
        scratch_shapes=[
            pltpu.VMEM((T * Bp, 4 * H), jnp.float32),         # hoisted input projection
            pltpu.VMEM((T * Bp, H), jnp.float32),             # per-step hidden states
        ],
    )(x2d, wih4, whh4, b4, wlin_t, blin)

    y_tm = y2d.reshape(T, Bp, Op)[:, :B, :O]                  # drop batch/output padding
    return jnp.swapaxes(y_tm, 0, 1).astype(x.dtype)           # (B, T, O)


def reference_forward(x, W_ih, W_hh, b_ih, b_hh, W_lin, b_lin):
    """Pure-JAX reference mirroring torch.nn.LSTM(batch_first=True) + Linear."""
    B, T, I = x.shape
    H = W_hh.shape[1]

    def step(carry, x_t):
        h, c = carry
        gates = x_t @ W_ih.T + b_ih + h @ W_hh.T + b_hh
        i, f, g, o = jnp.split(gates, 4, axis=-1)
        i = jax.nn.sigmoid(i)
        f = jax.nn.sigmoid(f)
        g = jnp.tanh(g)
        o = jax.nn.sigmoid(o)
        c = f * c + i * g
        h = o * jnp.tanh(c)
        return (h, c), h

    h0 = jnp.zeros((B, H), jnp.float32)
    c0 = jnp.zeros((B, H), jnp.float32)
    _, hs = jax.lax.scan(step, (h0, c0), jnp.swapaxes(x, 0, 1))
    lstm_out = jnp.swapaxes(hs, 0, 1)                         # (B, T, H)
    return lstm_out @ W_lin.T + b_lin                         # (B, T, O)


if __name__ == "__main__":
    # Small shapes consistent with LSTMModel(input_features, hidden_dim, output_steps)
    batch, seq = 2, 8
    input_features, hidden_dim, output_steps = 4, 32, 4

    key = jax.random.PRNGKey(0)
    kx, k1, k2, k3, k4, k5, k6 = jax.random.split(key, 7)

    # Deterministic parameter init (PyTorch-style uniform(-1/sqrt(H), 1/sqrt(H)))
    s = 1.0 / jnp.sqrt(jnp.float32(hidden_dim))
    W_ih = jax.random.uniform(k1, (4 * hidden_dim, input_features), jnp.float32, -s, s)
    W_hh = jax.random.uniform(k2, (4 * hidden_dim, hidden_dim), jnp.float32, -s, s)
    b_ih = jax.random.uniform(k3, (4 * hidden_dim,), jnp.float32, -s, s)
    b_hh = jax.random.uniform(k4, (4 * hidden_dim,), jnp.float32, -s, s)
    W_lin = jax.random.uniform(k5, (output_steps, hidden_dim), jnp.float32, -s, s)
    b_lin = jax.random.uniform(k6, (output_steps,), jnp.float32, -s, s)

    x = jax.random.normal(kx, (batch, seq, input_features), jnp.float32)

    y = lstm_model_forward(x, W_ih, W_hh, b_ih, b_hh, W_lin, b_lin)
    y = jax.block_until_ready(y)

    y_ref = reference_forward(x, W_ih, W_hh, b_ih, b_hh, W_lin, b_lin)
    assert y.shape == (batch, seq, output_steps)
    assert jnp.allclose(y, y_ref, atol=2e-5, rtol=2e-5), "mismatch vs reference"

    print("KERNEL_OK")
</pallas_src>

<mosaic_0001>
module attributes {stable_mosaic.version = 11 : i64} {
  func.func @lstm_kernel(%arg0: memref<64x4xf32, #tpu.memory_space<vmem>>, %arg1: memref<4x128xf32, #tpu.memory_space<vmem>>, %arg2: memref<32x128xf32, #tpu.memory_space<vmem>>, %arg3: memref<1x128xf32, #tpu.memory_space<vmem>>, %arg4: memref<32x128xf32, #tpu.memory_space<vmem>>, %arg5: memref<1x128xf32, #tpu.memory_space<vmem>>, %arg6: memref<64x128xf32, #tpu.memory_space<vmem>>, %arg7: memref<64x128xf32, #tpu.memory_space<vmem>>, %arg8: memref<64x32xf32, #tpu.memory_space<vmem>>) attributes {dimension_semantics = [], scalar_prefetch = 0 : i64, scratch_operands = 2 : i64, tpu.core_type = #tpu.core_type<tc>} {
    %c0 = arith.constant 0 : index
    %c0_0 = arith.constant 0 : index
    %0 = vector.load %arg0[%c0, %c0_0] : memref<64x4xf32, #tpu.memory_space<vmem>>, vector<64x4xf32>
    %c0_1 = arith.constant 0 : index
    %c0_2 = arith.constant 0 : index
    %1 = vector.load %arg1[%c0_1, %c0_2] : memref<4x128xf32, #tpu.memory_space<vmem>>, vector<4x128xf32>
    %cst = arith.constant dense<0.000000e+00> : vector<64x128xf32>
    %2 = tpu.matmul %0, %1, %cst {dimension_numbers = #tpu.dot_dimension_numbers<[1], [0], [0], [1], [0, 0, 1, 1], [], []>} : vector<64x4xf32>, vector<4x128xf32>, vector<64x128xf32> -> vector<64x128xf32>
    %c0_3 = arith.constant 0 : index
    %c0_4 = arith.constant 0 : index
    %3 = vector.load %arg3[%c0_3, %c0_4] : memref<1x128xf32, #tpu.memory_space<vmem>>, vector<1x128xf32>
    %4 = vector.broadcast %3 : vector<1x128xf32> to vector<64x128xf32>
    %5 = arith.addf %2, %4 : vector<64x128xf32>
    %c0_5 = arith.constant 0 : index
    %c0_6 = arith.constant 0 : index
    %6 = vector.load %arg7[%c0_5, %c0_6] : memref<64x128xf32, #tpu.memory_space<vmem>>, vector<64x128xf32>
    tpu.vector_store %arg7[%c0_5, %c0_6], %5 {strides = array<i32>} : memref<64x128xf32, #tpu.memory_space<vmem>>, vector<64x128xf32>,
    %c0_7 = arith.constant 0 : index
    %c0_8 = arith.constant 0 : index
    %7 = vector.load %arg2[%c0_7, %c0_8] : memref<32x128xf32, #tpu.memory_space<vmem>>, vector<32x128xf32>
    %cst_9 = arith.constant 0.000000e+00 : f32
    %8 = vector.broadcast %cst_9 : f32 to vector<8x32xf32>
    %cst_10 = arith.constant 0.000000e+00 : f32
    %9 = vector.broadcast %cst_10 : f32 to vector<8x32xf32>
    %c0_11 = arith.constant 0 : index
    %c0_12 = arith.constant 0 : index
    %10 = vector.load %arg7[%c0_11, %c0_12] : memref<64x128xf32, #tpu.memory_space<vmem>>, vector<8x128xf32>
    %cst_13 = arith.constant dense<0.000000e+00> : vector<8x128xf32>
    %11 = tpu.matmul %8, %7, %cst_13 {dimension_numbers = #tpu.dot_dimension_numbers<[1], [0], [0], [1], [0, 0, 1, 1], [], []>} : vector<8x32xf32>, vector<32x128xf32>, vector<8x128xf32> -> vector<8x128xf32>
    %12 = arith.addf %10, %11 : vector<8x128xf32>
    %cst_14 = arith.constant 5.000000e-01 : f32
    %13 = vector.broadcast %cst_14 : f32 to vector<8x128xf32>
    %14 = arith.mulf %13, %12 : vector<8x128xf32>
    %15 = math.tanh %14 : vector<8x128xf32>
    %cst_15 = arith.constant 1.000000e+00 : f32
    %16 = vector.broadcast %cst_15 : f32 to vector<8x128xf32>
    %17 = arith.addf %15, %16 : vector<8x128xf32>
    %cst_16 = arith.constant 5.000000e-01 : f32
    %18 = vector.broadcast %cst_16 : f32 to vector<8x128xf32>
    %19 = arith.mulf %18, %17 : vector<8x128xf32>
    %20 = math.tanh %12 : vector<8x128xf32>
    %21 = vector.extract_strided_slice %19 {offsets = [0, 0], sizes = [8, 32], strides = [1, 1]} : vector<8x128xf32> to vector<8x32xf32>
    %22 = vector.extract_strided_slice %19 {offsets = [0, 32], sizes = [8, 32], strides = [1, 1]} : vector<8x128xf32> to vector<8x32xf32>
    %23 = vector.extract_strided_slice %20 {offsets = [0, 64], sizes = [8, 32], strides = [1, 1]} : vector<8x128xf32> to vector<8x32xf32>
    %24 = vector.extract_strided_slice %19 {offsets = [0, 96], sizes = [8, 32], strides = [1, 1]} : vector<8x128xf32> to vector<8x32xf32>
    %25 = arith.mulf %22, %9 : vector<8x32xf32>
    %26 = arith.mulf %21, %23 : vector<8x32xf32>
    %27 = arith.addf %25, %26 : vector<8x32xf32>
    %28 = math.tanh %27 : vector<8x32xf32>
    %29 = arith.mulf %24, %28 : vector<8x32xf32>
    %c0_17 = arith.constant 0 : index
    %c0_18 = arith.constant 0 : index
    %30 = vector.load %arg8[%c0_17, %c0_18] : memref<64x32xf32, #tpu.memory_space<vmem>>, vector<8x32xf32>
    tpu.vector_store %arg8[%c0_17, %c0_18], %29 {strides = array<i32>} : memref<64x32xf32, #tpu.memory_space<vmem>>, vector<8x32xf32>,
    %c8 = arith.constant 8 : index
    %c0_19 = arith.constant 0 : index
    %31 = vector.load %arg7[%c8, %c0_19] : memref<64x128xf32, #tpu.memory_space<vmem>>, vector<8x128xf32>
    %cst_20 = arith.constant dense<0.000000e+00> : vector<8x128xf32>
    %32 = tpu.matmul %29, %7, %cst_20 {dimension_numbers = #tpu.dot_dimension_numbers<[1], [0], [0], [1], [0, 0, 1, 1], [], []>} : vector<8x32xf32>, vector<32x128xf32>, vector<8x128xf32> -> vector<8x128xf32>
    %33 = arith.addf %31, %32 : vector<8x128xf32>
    %cst_21 = arith.constant 5.000000e-01 : f32
    %34 = vector.broadcast %cst_21 : f32 to vector<8x128xf32>
    %35 = arith.mulf %34, %33 : vector<8x128xf32>
    %36 = math.tanh %35 : vector<8x128xf32>
    %cst_22 = arith.constant 1.000000e+00 : f32
    %37 = vector.broadcast %cst_22 : f32 to vector<8x128xf32>
    %38 = arith.addf %36, %37 : vector<8x128xf32>
    %cst_23 = arith.constant 5.000000e-01 : f32
    %39 = vector.broadcast %cst_23 : f32 to vector<8x128xf32>
    %40 = arith.mulf %39, %38 : vector<8x128xf32>
    %41 = math.tanh %33 : vector<8x128xf32>
    %42 = vector.extract_strided_slice %40 {offsets = [0, 0], sizes = [8, 32], strides = [1, 1]} : vector<8x128xf32> to vector<8x32xf32>
    %43 = vector.extract_strided_slice %40 {offsets = [0, 32], sizes = [8, 32], strides = [1, 1]} : vector<8x128xf32> to vector<8x32xf32>
    %44 = vector.extract_strided_slice %41 {offsets = [0, 64], sizes = [8, 32], strides = [1, 1]} : vector<8x128xf32> to vector<8x32xf32>
    %45 = vector.extract_strided_slice %40 {offsets = [0, 96], sizes = [8, 32], strides = [1, 1]} : vector<8x128xf32> to vector<8x32xf32>
    %46 = arith.mulf %43, %27 : vector<8x32xf32>
    %47 = arith.mulf %42, %44 : vector<8x32xf32>
    %48 = arith.addf %46, %47 : vector<8x32xf32>
    %49 = math.tanh %48 : vector<8x32xf32>
    %50 = arith.mulf %45, %49 : vector<8x32xf32>
    %c8_24 = arith.constant 8 : index
    %c0_25 = arith.constant 0 : index
    %51 = vector.load %arg8[%c8_24, %c0_25] : memref<64x32xf32, #tpu.memory_space<vmem>>, vector<8x32xf32>
    tpu.vector_store %arg8[%c8_24, %c0_25], %50 {strides = array<i32>} : memref<64x32xf32, #tpu.memory_space<vmem>>, vector<8x32xf32>,
    %c16 = arith.constant 16 : index
    %c0_26 = arith.constant 0 : index
    %52 = vector.load %arg7[%c16, %c0_26] : memref<64x128xf32, #tpu.memory_space<vmem>>, vector<8x128xf32>
    %cst_27 = arith.constant dense<0.000000e+00> : vector<8x128xf32>
    %53 = tpu.matmul %50, %7, %cst_27 {dimension_numbers = #tpu.dot_dimension_numbers<[1], [0], [0], [1], [0, 0, 1, 1], [], []>} : vector<8x32xf32>, vector<32x128xf32>, vector<8x128xf32> -> vector<8x128xf32>
    %54 = arith.addf %52, %53 : vector<8x128xf32>
    %cst_28 = arith.constant 5.000000e-01 : f32
    %55 = vector.broadcast %cst_28 : f32 to vector<8x128xf32>
    %56 = arith.mulf %55, %54 : vector<8x128xf32>
    %57 = math.tanh %56 : vector<8x128xf32>
    %cst_29 = arith.constant 1.000000e+00 : f32
    %58 = vector.broadcast %cst_29 : f32 to vector<8x128xf32>
    %59 = arith.addf %57, %58 : vector<8x128xf32>
    %cst_30 = arith.constant 5.000000e-01 : f32
    %60 = vector.broadcast %cst_30 : f32 to vector<8x128xf32>
    %61 = arith.mulf %60, %59 : vector<8x128xf32>
    %62 = math.tanh %54 : vector<8x128xf32>
    %63 = vector.extract_strided_slice %61 {offsets = [0, 0], sizes = [8, 32], strides = [1, 1]} : vector<8x128xf32> to vector<8x32xf32>
    %64 = vector.extract_strided_slice %61 {offsets = [0, 32], sizes = [8, 32], strides = [1, 1]} : vector<8x128xf32> to vector<8x32xf32>
    %65 = vector.extract_strided_slice %62 {offsets = [0, 64], sizes = [8, 32], strides = [1, 1]} : vector<8x128xf32> to vector<8x32xf32>
    %66 = vector.extract_strided_slice %61 {offsets = [0, 96], sizes = [8, 32], strides = [1, 1]} : vector<8x128xf32> to vector<8x32xf32>
    %67 = arith.mulf %64, %48 : vector<8x32xf32>
    %68 = arith.mulf %63, %65 : vector<8x32xf32>
    %69 = arith.addf %67, %68 : vector<8x32xf32>
    %70 = math.tanh %69 : vector<8x32xf32>
    %71 = arith.mulf %66, %70 : vector<8x32xf32>
    %c16_31 = arith.constant 16 : index
    %c0_32 = arith.constant 0 : index
    %72 = vector.load %arg8[%c16_31, %c0_32] : memref<64x32xf32, #tpu.memory_space<vmem>>, vector<8x32xf32>
    tpu.vector_store %arg8[%c16_31, %c0_32], %71 {strides = array<i32>} : memref<64x32xf32, #tpu.memory_space<vmem>>, vector<8x32xf32>,
    %c24 = arith.constant 24 : index
    %c0_33 = arith.constant 0 : index
    %73 = vector.load %arg7[%c24, %c0_33] : memref<64x128xf32, #tpu.memory_space<vmem>>, vector<8x128xf32>
    %cst_34 = arith.constant dense<0.000000e+00> : vector<8x128xf32>
    %74 = tpu.matmul %71, %7, %cst_34 {dimension_numbers = #tpu.dot_dimension_numbers<[1], [0], [0], [1], [0, 0, 1, 1], [], []>} : vector<8x32xf32>, vector<32x128xf32>, vector<8x128xf32> -> vector<8x128xf32>
    %75 = arith.addf %73, %74 : vector<8x128xf32>
    %cst_35 = arith.constant 5.000000e-01 : f32
    %76 = vector.broadcast %cst_35 : f32 to vector<8x128xf32>
    %77 = arith.mulf %76, %75 : vector<8x128xf32>
    %78 = math.tanh %77 : vector<8x128xf32>
    %cst_36 = arith.constant 1.000000e+00 : f32
    %79 = vector.broadcast %cst_36 : f32 to vector<8x128xf32>
    %80 = arith.addf %78, %79 : vector<8x128xf32>
    %cst_37 = arith.constant 5.000000e-01 : f32
    %81 = vector.broadcast %cst_37 : f32 to vector<8x128xf32>
    %82 = arith.mulf %81, %80 : vector<8x128xf32>
    %83 = math.tanh %75 : vector<8x128xf32>
    %84 = vector.extract_strided_slice %82 {offsets = [0, 0], sizes = [8, 32], strides = [1, 1]} : vector<8x128xf32> to vector<8x32xf32>
    %85 = vector.extract_strided_slice %82 {offsets = [0, 32], sizes = [8, 32], strides = [1, 1]} : vector<8x128xf32> to vector<8x32xf32>
    %86 = vector.extract_strided_slice %83 {offsets = [0, 64], sizes = [8, 32], strides = [1, 1]} : vector<8x128xf32> to vector<8x32xf32>
    %87 = vector.extract_strided_slice %82 {offsets = [0, 96], sizes = [8, 32], strides = [1, 1]} : vector<8x128xf32> to vector<8x32xf32>
    %88 = arith.mulf %85, %69 : vector<8x32xf32>
    %89 = arith.mulf %84, %86 : vector<8x32xf32>
    %90 = arith.addf %88, %89 : vector<8x32xf32>
    %91 = math.tanh %90 : vector<8x32xf32>
    %92 = arith.mulf %87, %91 : vector<8x32xf32>
    %c24_38 = arith.constant 24 : index
    %c0_39 = arith.constant 0 : index
    %93 = vector.load %arg8[%c24_38, %c0_39] : memref<64x32xf32, #tpu.memory_space<vmem>>, vector<8x32xf32>
    tpu.vector_store %arg8[%c24_38, %c0_39], %92 {strides = array<i32>} : memref<64x32xf32, #tpu.memory_space<vmem>>, vector<8x32xf32>,
    %c32 = arith.constant 32 : index
    %c0_40 = arith.constant 0 : index
    %94 = vector.load %arg7[%c32, %c0_40] : memref<64x128xf32, #tpu.memory_space<vmem>>, vector<8x128xf32>
    %cst_41 = arith.constant dense<0.000000e+00> : vector<8x128xf32>
    %95 = tpu.matmul %92, %7, %cst_41 {dimension_numbers = #tpu.dot_dimension_numbers<[1], [0], [0], [1], [0, 0, 1, 1], [], []>} : vector<8x32xf32>, vector<32x128xf32>, vector<8x128xf32> -> vector<8x128xf32>
    %96 = arith.addf %94, %95 : vector<8x128xf32>
    %cst_42 = arith.constant 5.000000e-01 : f32
    %97 = vector.broadcast %cst_42 : f32 to vector<8x128xf32>
    %98 = arith.mulf %97, %96 : vector<8x128xf32>
    %99 = math.tanh %98 : vector<8x128xf32>
    %cst_43 = arith.constant 1.000000e+00 : f32
    %100 = vector.broadcast %cst_43 : f32 to vector<8x128xf32>
    %101 = arith.addf %99, %100 : vector<8x128xf32>
    %cst_44 = arith.constant 5.000000e-01 : f32
    %102 = vector.broadcast %cst_44 : f32 to vector<8x128xf32>
    %103 = arith.mulf %102, %101 : vector<8x128xf32>
    %104 = math.tanh %96 : vector<8x128xf32>
    %105 = vector.extract_strided_slice %103 {offsets = [0, 0], sizes = [8, 32], strides = [1, 1]} : vector<8x128xf32> to vector<8x32xf32>
    %106 = vector.extract_strided_slice %103 {offsets = [0, 32], sizes = [8, 32], strides = [1, 1]} : vector<8x128xf32> to vector<8x32xf32>
    %107 = vector.extract_strided_slice %104 {offsets = [0, 64], sizes = [8, 32], strides = [1, 1]} : vector<8x128xf32> to vector<8x32xf32>
    %108 = vector.extract_strided_slice %103 {offsets = [0, 96], sizes = [8, 32], strides = [1, 1]} : vector<8x128xf32> to vector<8x32xf32>
    %109 = arith.mulf %106, %90 : vector<8x32xf32>
    %110 = arith.mulf %105, %107 : vector<8x32xf32>
    %111 = arith.addf %109, %110 : vector<8x32xf32>
    %112 = math.tanh %111 : vector<8x32xf32>
    %113 = arith.mulf %108, %112 : vector<8x32xf32>
    %c32_45 = arith.constant 32 : index
    %c0_46 = arith.constant 0 : index
    %114 = vector.load %arg8[%c32_45, %c0_46] : memref<64x32xf32, #tpu.memory_space<vmem>>, vector<8x32xf32>
    tpu.vector_store %arg8[%c32_45, %c0_46], %113 {strides = array<i32>} : memref<64x32xf32, #tpu.memory_space<vmem>>, vector<8x32xf32>,
    %c40 = arith.constant 40 : index
    %c0_47 = arith.constant 0 : index
    %115 = vector.load %arg7[%c40, %c0_47] : memref<64x128xf32, #tpu.memory_space<vmem>>, vector<8x128xf32>
    %cst_48 = arith.constant dense<0.000000e+00> : vector<8x128xf32>
    %116 = tpu.matmul %113, %7, %cst_48 {dimension_numbers = #tpu.dot_dimension_numbers<[1], [0], [0], [1], [0, 0, 1, 1], [], []>} : vector<8x32xf32>, vector<32x128xf32>, vector<8x128xf32> -> vector<8x128xf32>
    %117 = arith.addf %115, %116 : vector<8x128xf32>
    %cst_49 = arith.constant 5.000000e-01 : f32
    %118 = vector.broadcast %cst_49 : f32 to vector<8x128xf32>
    %119 = arith.mulf %118, %117 : vector<8x128xf32>
    %120 = math.tanh %119 : vector<8x128xf32>
    %cst_50 = arith.constant 1.000000e+00 : f32
    %121 = vector.broadcast %cst_50 : f32 to vector<8x128xf32>
    %122 = arith.addf %120, %121 : vector<8x128xf32>
    %cst_51 = arith.constant 5.000000e-01 : f32
    %123 = vector.broadcast %cst_51 : f32 to vector<8x128xf32>
    %124 = arith.mulf %123, %122 : vector<8x128xf32>
    %125 = math.tanh %117 : vector<8x128xf32>
    %126 = vector.extract_strided_slice %124 {offsets = [0, 0], sizes = [8, 32], strides = [1, 1]} : vector<8x128xf32> to vector<8x32xf32>
    %127 = vector.extract_strided_slice %124 {offsets = [0, 32], sizes = [8, 32], strides = [1, 1]} : vector<8x128xf32> to vector<8x32xf32>
    %128 = vector.extract_strided_slice %125 {offsets = [0, 64], sizes = [8, 32], strides = [1, 1]} : vector<8x128xf32> to vector<8x32xf32>
    %129 = vector.extract_strided_slice %124 {offsets = [0, 96], sizes = [8, 32], strides = [1, 1]} : vector<8x128xf32> to vector<8x32xf32>
    %130 = arith.mulf %127, %111 : vector<8x32xf32>
    %131 = arith.mulf %126, %128 : vector<8x32xf32>
    %132 = arith.addf %130, %131 : vector<8x32xf32>
    %133 = math.tanh %132 : vector<8x32xf32>
    %134 = arith.mulf %129, %133 : vector<8x32xf32>
    %c40_52 = arith.constant 40 : index
    %c0_53 = arith.constant 0 : index
    %135 = vector.load %arg8[%c40_52, %c0_53] : memref<64x32xf32, #tpu.memory_space<vmem>>, vector<8x32xf32>
    tpu.vector_store %arg8[%c40_52, %c0_53], %134 {strides = array<i32>} : memref<64x32xf32, #tpu.memory_space<vmem>>, vector<8x32xf32>,
    %c48 = arith.constant 48 : index
    %c0_54 = arith.constant 0 : index
    %136 = vector.load %arg7[%c48, %c0_54] : memref<64x128xf32, #tpu.memory_space<vmem>>, vector<8x128xf32>
    %cst_55 = arith.constant dense<0.000000e+00> : vector<8x128xf32>
    %137 = tpu.matmul %134, %7, %cst_55 {dimension_numbers = #tpu.dot_dimension_numbers<[1], [0], [0], [1], [0, 0, 1, 1], [], []>} : vector<8x32xf32>, vector<32x128xf32>, vector<8x128xf32> -> vector<8x128xf32>
    %138 = arith.addf %136, %137 : vector<8x128xf32>
    %cst_56 = arith.constant 5.000000e-01 : f32
    %139 = vector.broadcast %cst_56 : f32 to vector<8x128xf32>
    %140 = arith.mulf %139, %138 : vector<8x128xf32>
    %141 = math.tanh %140 : vector<8x128xf32>
    %cst_57 = arith.constant 1.000000e+00 : f32
    %142 = vector.broadcast %cst_57 : f32 to vector<8x128xf32>
    %143 = arith.addf %141, %142 : vector<8x128xf32>
    %cst_58 = arith.constant 5.000000e-01 : f32
    %144 = vector.broadcast %cst_58 : f32 to vector<8x128xf32>
    %145 = arith.mulf %144, %143 : vector<8x128xf32>
    %146 = math.tanh %138 : vector<8x128xf32>
    %147 = vector.extract_strided_slice %145 {offsets = [0, 0], sizes = [8, 32], strides = [1, 1]} : vector<8x128xf32> to vector<8x32xf32>
    %148 = vector.extract_strided_slice %145 {offsets = [0, 32], sizes = [8, 32], strides = [1, 1]} : vector<8x128xf32> to vector<8x32xf32>
    %149 = vector.extract_strided_slice %146 {offsets = [0, 64], sizes = [8, 32], strides = [1, 1]} : vector<8x128xf32> to vector<8x32xf32>
    %150 = vector.extract_strided_slice %145 {offsets = [0, 96], sizes = [8, 32], strides = [1, 1]} : vector<8x128xf32> to vector<8x32xf32>
    %151 = arith.mulf %148, %132 : vector<8x32xf32>
    %152 = arith.mulf %147, %149 : vector<8x32xf32>
    %153 = arith.addf %151, %152 : vector<8x32xf32>
    %154 = math.tanh %153 : vector<8x32xf32>
    %155 = arith.mulf %150, %154 : vector<8x32xf32>
    %c48_59 = arith.constant 48 : index
    %c0_60 = arith.constant 0 : index
    %156 = vector.load %arg8[%c48_59, %c0_60] : memref<64x32xf32, #tpu.memory_space<vmem>>, vector<8x32xf32>
    tpu.vector_store %arg8[%c48_59, %c0_60], %155 {strides = array<i32>} : memref<64x32xf32, #tpu.memory_space<vmem>>, vector<8x32xf32>,
    %c56 = arith.constant 56 : index
    %c0_61 = arith.constant 0 : index
    %157 = vector.load %arg7[%c56, %c0_61] : memref<64x128xf32, #tpu.memory_space<vmem>>, vector<8x128xf32>
    %cst_62 = arith.constant dense<0.000000e+00> : vector<8x128xf32>
    %158 = tpu.matmul %155, %7, %cst_62 {dimension_numbers = #tpu.dot_dimension_numbers<[1], [0], [0], [1], [0, 0, 1, 1], [], []>} : vector<8x32xf32>, vector<32x128xf32>, vector<8x128xf32> -> vector<8x128xf32>
    %159 = arith.addf %157, %158 : vector<8x128xf32>
    %cst_63 = arith.constant 5.000000e-01 : f32
    %160 = vector.broadcast %cst_63 : f32 to vector<8x128xf32>
    %161 = arith.mulf %160, %159 : vector<8x128xf32>
    %162 = math.tanh %161 : vector<8x128xf32>
    %cst_64 = arith.constant 1.000000e+00 : f32
    %163 = vector.broadcast %cst_64 : f32 to vector<8x128xf32>
    %164 = arith.addf %162, %163 : vector<8x128xf32>
    %cst_65 = arith.constant 5.000000e-01 : f32
    %165 = vector.broadcast %cst_65 : f32 to vector<8x128xf32>
    %166 = arith.mulf %165, %164 : vector<8x128xf32>
    %167 = math.tanh %159 : vector<8x128xf32>
    %168 = vector.extract_strided_slice %166 {offsets = [0, 0], sizes = [8, 32], strides = [1, 1]} : vector<8x128xf32> to vector<8x32xf32>
    %169 = vector.extract_strided_slice %166 {offsets = [0, 32], sizes = [8, 32], strides = [1, 1]} : vector<8x128xf32> to vector<8x32xf32>
    %170 = vector.extract_strided_slice %167 {offsets = [0, 64], sizes = [8, 32], strides = [1, 1]} : vector<8x128xf32> to vector<8x32xf32>
    %171 = vector.extract_strided_slice %166 {offsets = [0, 96], sizes = [8, 32], strides = [1, 1]} : vector<8x128xf32> to vector<8x32xf32>
    %172 = arith.mulf %169, %153 : vector<8x32xf32>
    %173 = arith.mulf %168, %170 : vector<8x32xf32>
    %174 = arith.addf %172, %173 : vector<8x32xf32>
    %175 = math.tanh %174 : vector<8x32xf32>
    %176 = arith.mulf %171, %175 : vector<8x32xf32>
    %c56_66 = arith.constant 56 : index
    %c0_67 = arith.constant 0 : index
    %177 = vector.load %arg8[%c56_66, %c0_67] : memref<64x32xf32, #tpu.memory_space<vmem>>, vector<8x32xf32>
    tpu.vector_store %arg8[%c56_66, %c0_67], %176 {strides = array<i32>} : memref<64x32xf32, #tpu.memory_space<vmem>>, vector<8x32xf32>,
    %c0_68 = arith.constant 0 : index
    %c0_69 = arith.constant 0 : index
    %178 = vector.load %arg8[%c0_68, %c0_69] : memref<64x32xf32, #tpu.memory_space<vmem>>, vector<64x32xf32>
    %c0_70 = arith.constant 0 : index
    %c0_71 = arith.constant 0 : index
    %179 = vector.load %arg4[%c0_70, %c0_71] : memref<32x128xf32, #tpu.memory_space<vmem>>, vector<32x128xf32>
    %cst_72 = arith.constant dense<0.000000e+00> : vector<64x128xf32>
    %180 = tpu.matmul %178, %179, %cst_72 {dimension_numbers = #tpu.dot_dimension_numbers<[1], [0], [0], [1], [0, 0, 1, 1], [], []>} : vector<64x32xf32>, vector<32x128xf32>, vector<64x128xf32> -> vector<64x128xf32>
    %c0_73 = arith.constant 0 : index
    %c0_74 = arith.constant 0 : index
    %181 = vector.load %arg5[%c0_73, %c0_74] : memref<1x128xf32, #tpu.memory_space<vmem>>, vector<1x128xf32>
    %182 = vector.broadcast %181 : vector<1x128xf32> to vector<64x128xf32>
    %183 = arith.addf %180, %182 : vector<64x128xf32>
    %c0_75 = arith.constant 0 : index
    %c0_76 = arith.constant 0 : index
    %184 = vector.load %arg6[%c0_75, %c0_76] : memref<64x128xf32, #tpu.memory_space<vmem>>, vector<64x128xf32>
    tpu.vector_store %arg6[%c0_75, %c0_76], %183 {strides = array<i32>} : memref<64x128xf32, #tpu.memory_space<vmem>>, vector<64x128xf32>,
    return
  }
}

</mosaic_0001>

<llo_original>
// kernel: tpu_custom_call.1
$region0: #{tpu_custom_call.1}
  #allocation0 [shape = 'u32[]', space=smem, size = 0x4, offset = 0x4, fixed_abs, tag = 'smem constant byte address 0x4 - core index']
  #allocation1 [shape = 'u32[72,128]{1,0:T(1,128)}', space=vmem, size = 0x9000, scoped, tag = 'internal scratch']
  #allocation2 [shape = 'f32[64,128]{1,0:T(8,128)}', space=vmem, size = 0x8000, scoped, tag = 'scratch operand']
  #allocation3 [shape = 'f32[64,32]{1,0:T(8,128)}', space=vmem, size = 0x8000, scoped, tag = 'scratch operand']
  %s0 = inlined_call_operand.vmem [shape: f32[64,4], index: 0, kind: input, shape index: {}]
  %s1 = inlined_call_operand.vmem [shape: f32[4,128], index: 1, kind: input, shape index: {}]
  %s2 = inlined_call_operand.vmem [shape: f32[32,128], index: 2, kind: input, shape index: {}]
  %s3 = inlined_call_operand.vmem [shape: f32[1,128], index: 3, kind: input, shape index: {}]
  %s4 = inlined_call_operand.vmem [shape: f32[32,128], index: 4, kind: input, shape index: {}]
  %s5 = inlined_call_operand.vmem [shape: f32[1,128], index: 5, kind: input, shape index: {}]
  %s6 = inlined_call_operand.hbm [shape: f32[64,128], index: 6, kind: output, shape index: {}]
  %s7 = sld [smem:[#allocation0]]
  $region34: #{tpu_custom_call.1} parent=0
    _
  %s9 = ssub.s32 1, %s7
  %s10 = scalar_select 0, %s9, %s7
  $region1: #{tpu_custom_call.1} parent=0
    #allocation4 [shape = 'u8[32768]{0}', space=vmem, size = 0x8000, scoped, tag = 'output window, operand 0, single buffered']
    #allocation5 [shape = 's32[1]{0}', space=sflag, size = 0x4, scoped, tag = 'scoped memory for tpu_custom_call.1']
    %11 = vsyncpa [#allocation5], 0
    // Predicated region
    $region2: #{tpu_custom_call.1} parent=1 // pred_check
      _
    $region3: #{tpu_custom_call.1} parent=1 // pred_check_branch
      %13 = sbr.rel (0) target = $region5
    $region4: #{tpu_custom_call.1} parent=1 // pred_region
      _
    $region5: #{tpu_custom_call.1} parent=1 // pred_fallthru
      _
    // Predicated region
    $region6: #{tpu_custom_call.1} parent=1 // pred_check
      _
    $region7: #{tpu_custom_call.1} parent=1 // pred_check_branch
      %15 = sbr.rel (0) target = $region9
    $region8: #{tpu_custom_call.1} parent=1 // pred_region
      _
    $region9: #{tpu_custom_call.1} parent=1 // pred_fallthru
      _
    // Predicated region
    $region10: #{tpu_custom_call.1} parent=1 // pred_check
      _
    $region11: #{tpu_custom_call.1} parent=1 // pred_check_branch
      %17 = sbr.rel (0) target = $region13
    $region12: #{tpu_custom_call.1} parent=1 // pred_region
      _
    $region13: #{tpu_custom_call.1} parent=1 // pred_fallthru
      _
    // Predicated region
    $region14: #{tpu_custom_call.1} parent=1 // pred_check
      _
    $region15: #{tpu_custom_call.1} parent=1 // pred_check_branch
      %19 = sbr.rel (0) target = $region17
    $region16: #{tpu_custom_call.1} parent=1 // pred_region
      _
    $region17: #{tpu_custom_call.1} parent=1 // pred_fallthru
      _
    // Predicated region
    $region18: #{tpu_custom_call.1} parent=1 // pred_check
      _
    $region19: #{tpu_custom_call.1} parent=1 // pred_check_branch
      %21 = sbr.rel (0) target = $region21
    $region20: #{tpu_custom_call.1} parent=1 // pred_region
      _
    $region21: #{tpu_custom_call.1} parent=1 // pred_fallthru
      _
    // Predicated region
    $region22: #{tpu_custom_call.1} parent=1 // pred_check
      _
    $region23: #{tpu_custom_call.1} parent=1 // pred_check_branch
      %23 = sbr.rel (0) target = $region25
    $region24: #{tpu_custom_call.1} parent=1 // pred_region
      _
    $region25: #{tpu_custom_call.1} parent=1 // pred_fallthru
      _
    %v24 = vld [vmem:[%s0] sm:$0xff]
    %v25 = vld [vmem:[%s0 + $0x8] sm:$0xff]
    %v26 = vld [vmem:[%s0 + $0x10] sm:$0xff]
    %v27 = vld [vmem:[%s0 + $0x18] sm:$0xff]
    %v28 = vld [vmem:[%s0 + $0x20] sm:$0xff]
    %v29 = vld [vmem:[%s0 + $0x28] sm:$0xff]
    %v30 = vld [vmem:[%s0 + $0x30] sm:$0xff]
    %v31 = vld [vmem:[%s0 + $0x38] sm:$0xff]
    %v32 = vld [vmem:[%s1] sm:$0xf]
    %v33 = vld [vmem:[%s3] sm:$0x1]
    %v35 = vperm.slane %v33, 0
    %vm37 = vcmask 31744
    %v39 = vsel %vm37, %v24, 0
    %v42 = vsel %vm37, %v25, 0
    %v45 = vsel %vm37, %v26, 0
    %v48 = vsel %vm37, %v27, 0
    %v51 = vsel %vm37, %v28, 0
    %v54 = vsel %vm37, %v29, 0
    %v57 = vsel %vm37, %v30, 0
    %v60 = vsel %vm37, %v31, 0
    %vm62 = vcmask 1043456
    %v64 = vsel %vm62, %v32, 0
    %66 = vmatpush.msra.mxu0 0.0
    %67 = vmatpush.msra.mxu0 0.0
    %68 = vmatpush.msra.mxu0 0.0
    %69 = vmatpush.msra.mxu0 0.0
    %70 = vmatpush.msra.mxu0 0.0
    %71 = vmatpush.msra.mxu0 0.0
    %72 = vmatpush.msra.mxu0 0.0
    %73 = vmatpush.msra.mxu0 0.0
    %74 = vmatpush.msra.mxu0 0.0
    %75 = vmatpush.msra.mxu0 0.0
    %76 = vmatpush.msra.mxu0 0.0
    %77 = vmatpush.msra.mxu0 0.0
    %78 = vmatpush.msra.mxu0 0.0
    %79 = vmatpush.msra.mxu0 0.0
    %80 = vmatpush.msra.mxu0 0.0
    %81 = vmatpush.msra.mxu0 %v64
    %82 = vmatmul.f32.gmra.mxu0 %v39
    %v83 = vpop.f32.mrf.mxu0
    %v84 = vadd.f32 %v35, %v83
    %85 = vmatmul.f32.gmra.mxu0 %v42
    %v86 = vpop.f32.mrf.mxu0
    %v87 = vadd.f32 %v35, %v86
    %88 = vmatmul.f32.gmra.mxu0 %v45
    %v89 = vpop.f32.mrf.mxu0
    %v90 = vadd.f32 %v35, %v89
    %91 = vmatmul.f32.gmra.mxu0 %v48
    %v92 = vpop.f32.mrf.mxu0
    %v93 = vadd.f32 %v35, %v92
    %94 = vmatmul.f32.gmra.mxu0 %v51
    %v95 = vpop.f32.mrf.mxu0
    %v96 = vadd.f32 %v35, %v95
    %97 = vmatmul.f32.gmra.mxu0 %v54
    %v98 = vpop.f32.mrf.mxu0
    %v99 = vadd.f32 %v35, %v98
    %100 = vmatmul.f32.gmra.mxu0 %v57
    %v101 = vpop.f32.mrf.mxu0
    %v102 = vadd.f32 %v35, %v101
    %103 = vmatmul.f32.gmra.mxu0 %v60
    %v104 = vpop.f32.mrf.mxu0
    %v105 = vadd.f32 %v35, %v104
    %106 = vdwg.mxu0
    %107 = vst [vmem:[#allocation2] sm:$0xff] %v84
    %108 = vst [vmem:[#allocation2 + $0x8] sm:$0xff] %v87
    %109 = vst [vmem:[#allocation2 + $0x10] sm:$0xff] %v90
    %110 = vst [vmem:[#allocation2 + $0x18] sm:$0xff] %v93
    %111 = vst [vmem:[#allocation2 + $0x20] sm:$0xff] %v96
    %112 = vst [vmem:[#allocation2 + $0x28] sm:$0xff] %v99
    %113 = vst [vmem:[#allocation2 + $0x30] sm:$0xff] %v102
    %114 = vst [vmem:[#allocation2 + $0x38] sm:$0xff] %v105
    %v115 = vld [vmem:[%s2] sm:$0xff]
    %v116 = vld [vmem:[%s2 + $0x8] sm:$0xff]
    %v117 = vld [vmem:[%s2 + $0x10] sm:$0xff]
    %v118 = vld [vmem:[%s2 + $0x18] sm:$0xff]
    %v119 = vld [vmem:[#allocation2] sm:$0xff]
    %vm120 = vcmask 261120
    %v122 = vsel %vm120, 0.0, 0
    %124 = vmatpush.msra.mxu0 0.0
    %125 = vmatpush.msra.mxu0 0.0
    %126 = vmatpush.msra.mxu0 0.0
    %127 = vmatpush.msra.mxu0 0.0
    %128 = vmatpush.msra.mxu0 0.0
    %129 = vmatpush.msra.mxu0 0.0
    %130 = vmatpush.msra.mxu0 0.0
    %131 = vmatpush.msra.mxu0 0.0
    %132 = vmatpush.msra.mxu0 0.0
    %133 = vmatpush.msra.mxu0 0.0
    %134 = vmatpush.msra.mxu0 0.0
    %135 = vmatpush.msra.mxu0 0.0
    %136 = vmatpush.msra.mxu0 %v118
    %137 = vmatpush.msra.mxu0 %v117
    %138 = vmatpush.msra.mxu0 %v116
    %139 = vmatpush.msra.mxu0 %v115
    %140 = vmatmul.f32.gmra.mxu0 %v122
    %v141 = vpop.f32.mrf.mxu0
    %v142 = vadd.f32 0.0, %v141
    %143 = vdwg.mxu0
    %v144 = vadd.f32 %v119, %v142
    %v145 = vmul.f32 %v144, 0.5
    %v146 = vtanh.pop %v145
    %v147 = vadd.f32 %v146, 1.0
    %v148 = vmul.f32 %v147, 0.5
    %v149 = vtanh.pop %v144
    %v150 = vmul.f32 %v148, 0.0
    %152 = vrot.lane.b32.xlu0 %v149, 64
    %v153 = vpop.permute.xlu0 %152
    %v155 = vmul.f32 %v148, %v153
    %157 = vrot.lane.b32.xlu0 %v155, 32
    %v158 = vpop.permute.xlu0 %157
    %v160 = vadd.f32 %v150, %v158
    %v161 = vtanh.pop %v160
    %163 = vrot.lane.b32.xlu0 %v161, 64
    %v164 = vpop.permute.xlu0 %163
    %v166 = vmul.f32 %v148, %v164
    %168 = vrot.lane.b32.xlu0 %v166, 32
    %v169 = vpop.permute.xlu0 %168
    %171 = vst.msk [vmem:[#allocation3] sm:$0xff] %vm120, %v169
    %v172 = vld [vmem:[#allocation2 + $0x8] sm:$0xff]
    %v173 = vsel %vm120, %v169, 0
    %175 = vmatpush.msra.mxu0 0.0
    %176 = vmatpush.msra.mxu0 0.0
    %177 = vmatpush.msra.mxu0 0.0
    %178 = vmatpush.msra.mxu0 0.0
    %179 = vmatpush.msra.mxu0 0.0
    %180 = vmatpush.msra.mxu0 0.0
    %181 = vmatpush.msra.mxu0 0.0
    %182 = vmatpush.msra.mxu0 0.0
    %183 = vmatpush.msra.mxu0 0.0
    %184 = vmatpush.msra.mxu0 0.0
    %185 = vmatpush.msra.mxu0 0.0
    %186 = vmatpush.msra.mxu0 0.0
    %187 = vmatpush.msra.mxu0 %v118
    %188 = vmatpush.msra.mxu0 %v117
    %189 = vmatpush.msra.mxu0 %v116
    %190 = vmatpush.msra.mxu0 %v115
    %191 = vmatmul.f32.gmra.mxu0 %v173
    %v192 = vpop.f32.mrf.mxu0
    %v193 = vadd.f32 0.0, %v192
    %194 = vdwg.mxu0
    %v195 = vadd.f32 %v172, %v193
    %v196 = vmul.f32 %v195, 0.5
    %v197 = vtanh.pop %v196
    %v198 = vadd.f32 %v197, 1.0
    %v199 = vmul.f32 %v198, 0.5
    %v200 = vtanh.pop %v195
    %v201 = vmul.f32 %v199, %v160
    %203 = vrot.lane.b32.xlu0 %v200, 64
    %v204 = vpop.permute.xlu0 %203
    %v206 = vmul.f32 %v199, %v204
    %208 = vrot.lane.b32.xlu0 %v206, 32
    %v209 = vpop.permute.xlu0 %208
    %v211 = vadd.f32 %v201, %v209
    %v212 = vtanh.pop %v211
    %214 = vrot.lane.b32.xlu0 %v212, 64
    %v215 = vpop.permute.xlu0 %214
    %v217 = vmul.f32 %v199, %v215
    %219 = vrot.lane.b32.xlu0 %v217, 32
    %v220 = vpop.permute.xlu0 %219
    %222 = vst.msk [vmem:[#allocation3 + $0x8] sm:$0xff] %vm120, %v220
    %v223 = vld [vmem:[#allocation2 + $0x10] sm:$0xff]
    %v224 = vsel %vm120, %v220, 0
    %226 = vmatpush.msra.mxu0 0.0
    %227 = vmatpush.msra.mxu0 0.0
    %228 = vmatpush.msra.mxu0 0.0
    %229 = vmatpush.msra.mxu0 0.0
    %230 = vmatpush.msra.mxu0 0.0
    %231 = vmatpush.msra.mxu0 0.0
    %232 = vmatpush.msra.mxu0 0.0
    %233 = vmatpush.msra.mxu0 0.0
    %234 = vmatpush.msra.mxu0 0.0
    %235 = vmatpush.msra.mxu0 0.0
    %236 = vmatpush.msra.mxu0 0.0
    %237 = vmatpush.msra.mxu0 0.0
    %238 = vmatpush.msra.mxu0 %v118
    %239 = vmatpush.msra.mxu0 %v117
    %240 = vmatpush.msra.mxu0 %v116
    %241 = vmatpush.msra.mxu0 %v115
    %242 = vmatmul.f32.gmra.mxu0 %v224
    %v243 = vpop.f32.mrf.mxu0
    %v244 = vadd.f32 0.0, %v243
    %245 = vdwg.mxu0
    %v246 = vadd.f32 %v223, %v244
    %v247 = vmul.f32 %v246, 0.5
    %v248 = vtanh.pop %v247
    %v249 = vadd.f32 %v248, 1.0
    %v250 = vmul.f32 %v249, 0.5
    %v251 = vtanh.pop %v246
    %v252 = vmul.f32 %v250, %v211
    %254 = vrot.lane.b32.xlu0 %v251, 64
    %v255 = vpop.permute.xlu0 %254
    %v257 = vmul.f32 %v250, %v255
    %259 = vrot.lane.b32.xlu0 %v257, 32
    %v260 = vpop.permute.xlu0 %259
    %v262 = vadd.f32 %v252, %v260
    %v263 = vtanh.pop %v262
    %265 = vrot.lane.b32.xlu0 %v263, 64
    %v266 = vpop.permute.xlu0 %265
    %v268 = vmul.f32 %v250, %v266
    %270 = vrot.lane.b32.xlu0 %v268, 32
    %v271 = vpop.permute.xlu0 %270
    %273 = vst.msk [vmem:[#allocation3 + $0x10] sm:$0xff] %vm120, %v271
    %v274 = vld [vmem:[#allocation2 + $0x18] sm:$0xff]
    %v275 = vsel %vm120, %v271, 0
    %277 = vmatpush.msra.mxu0 0.0
    %278 = vmatpush.msra.mxu0 0.0
    %279 = vmatpush.msra.mxu0 0.0
    %280 = vmatpush.msra.mxu0 0.0
    %281 = vmatpush.msra.mxu0 0.0
    %282 = vmatpush.msra.mxu0 0.0
    %283 = vmatpush.msra.mxu0 0.0
    %284 = vmatpush.msra.mxu0 0.0
    %285 = vmatpush.msra.mxu0 0.0
    %286 = vmatpush.msra.mxu0 0.0
    %287 = vmatpush.msra.mxu0 0.0
    %288 = vmatpush.msra.mxu0 0.0
    %289 = vmatpush.msra.mxu0 %v118
    %290 = vmatpush.msra.mxu0 %v117
    %291 = vmatpush.msra.mxu0 %v116
    %292 = vmatpush.msra.mxu0 %v115
    %293 = vmatmul.f32.gmra.mxu0 %v275
    %v294 = vpop.f32.mrf.mxu0
    %v295 = vadd.f32 0.0, %v294
    %296 = vdwg.mxu0
    %v297 = vadd.f32 %v274, %v295
    %v298 = vmul.f32 %v297, 0.5
    %v299 = vtanh.pop %v298
    %v300 = vadd.f32 %v299, 1.0
    %v301 = vmul.f32 %v300, 0.5
    %v302 = vtanh.pop %v297
    %v303 = vmul.f32 %v301, %v262
    %305 = vrot.lane.b32.xlu0 %v302, 64
    %v306 = vpop.permute.xlu0 %305
    %v308 = vmul.f32 %v301, %v306
    %310 = vrot.lane.b32.xlu0 %v308, 32
    %v311 = vpop.permute.xlu0 %310
    %v313 = vadd.f32 %v303, %v311
    %v314 = vtanh.pop %v313
    %316 = vrot.lane.b32.xlu0 %v314, 64
    %v317 = vpop.permute.xlu0 %316
    %v319 = vmul.f32 %v301, %v317
    %321 = vrot.lane.b32.xlu0 %v319, 32
    %v322 = vpop.permute.xlu0 %321
    %324 = vst.msk [vmem:[#allocation3 + $0x18] sm:$0xff] %vm120, %v322
    %v325 = vld [vmem:[#allocation2 + $0x20] sm:$0xff]
    %v326 = vsel %vm120, %v322, 0
    %328 = vmatpush.msra.mxu0 0.0
    %329 = vmatpush.msra.mxu0 0.0
    %330 = vmatpush.msra.mxu0 0.0
    %331 = vmatpush.msra.mxu0 0.0
    %332 = vmatpush.msra.mxu0 0.0
    %333 = vmatpush.msra.mxu0 0.0
    %334 = vmatpush.msra.mxu0 0.0
    %335 = vmatpush.msra.mxu0 0.0
    %336 = vmatpush.msra.mxu0 0.0
    %337 = vmatpush.msra.mxu0 0.0
    %338 = vmatpush.msra.mxu0 0.0
    %339 = vmatpush.msra.mxu0 0.0
    %340 = vmatpush.msra.mxu0 %v118
    %341 = vmatpush.msra.mxu0 %v117
    %342 = vmatpush.msra.mxu0 %v116
    %343 = vmatpush.msra.mxu0 %v115
    %344 = vmatmul.f32.gmra.mxu0 %v326
    %v345 = vpop.f32.mrf.mxu0
    %v346 = vadd.f32 0.0, %v345
    %347 = vdwg.mxu0
    %v348 = vadd.f32 %v325, %v346
    %v349 = vmul.f32 %v348, 0.5
    %v350 = vtanh.pop %v349
    %v351 = vadd.f32 %v350, 1.0
    %v352 = vmul.f32 %v351, 0.5
    %v353 = vtanh.pop %v348
    %v354 = vmul.f32 %v352, %v313
    %356 = vrot.lane.b32.xlu0 %v353, 64
    %v357 = vpop.permute.xlu0 %356
    %v359 = vmul.f32 %v352, %v357
    %361 = vrot.lane.b32.xlu0 %v359, 32
    %v362 = vpop.permute.xlu0 %361
    %v364 = vadd.f32 %v354, %v362
    %v365 = vtanh.pop %v364
    %367 = vrot.lane.b32.xlu0 %v365, 64
    %v368 = vpop.permute.xlu0 %367
    %v370 = vmul.f32 %v352, %v368
    %372 = vrot.lane.b32.xlu0 %v370, 32
    %v373 = vpop.permute.xlu0 %372
    %375 = vst.msk [vmem:[#allocation3 + $0x20] sm:$0xff] %vm120, %v373
    %v376 = vld [vmem:[#allocation2 + $0x28] sm:$0xff]
    %v377 = vsel %vm120, %v373, 0
    %379 = vmatpush.msra.mxu0 0.0
    %380 = vmatpush.msra.mxu0 0.0
    %381 = vmatpush.msra.mxu0 0.0
    %382 = vmatpush.msra.mxu0 0.0
    %383 = vmatpush.msra.mxu0 0.0
    %384 = vmatpush.msra.mxu0 0.0
    %385 = vmatpush.msra.mxu0 0.0
    %386 = vmatpush.msra.mxu0 0.0
    %387 = vmatpush.msra.mxu0 0.0
    %388 = vmatpush.msra.mxu0 0.0
    %389 = vmatpush.msra.mxu0 0.0
    %390 = vmatpush.msra.mxu0 0.0
    %391 = vmatpush.msra.mxu0 %v118
    %392 = vmatpush.msra.mxu0 %v117
    %393 = vmatpush.msra.mxu0 %v116
    %394 = vmatpush.msra.mxu0 %v115
    %395 = vmatmul.f32.gmra.mxu0 %v377
    %v396 = vpop.f32.mrf.mxu0
    %v397 = vadd.f32 0.0, %v396
    %398 = vdwg.mxu0
    %v399 = vadd.f32 %v376, %v397
    %v400 = vmul.f32 %v399, 0.5
    %v401 = vtanh.pop %v400
    %v402 = vadd.f32 %v401, 1.0
    %v403 = vmul.f32 %v402, 0.5
    %v404 = vtanh.pop %v399
    %v405 = vmul.f32 %v403, %v364
    %407 = vrot.lane.b32.xlu0 %v404, 64
    %v408 = vpop.permute.xlu0 %407
    %v410 = vmul.f32 %v403, %v408
    %412 = vrot.lane.b32.xlu0 %v410, 32
    %v413 = vpop.permute.xlu0 %412
    %v415 = vadd.f32 %v405, %v413
    %v416 = vtanh.pop %v415
    %418 = vrot.lane.b32.xlu0 %v416, 64
    %v419 = vpop.permute.xlu0 %418
    %v421 = vmul.f32 %v403, %v419
    %423 = vrot.lane.b32.xlu0 %v421, 32
    %v424 = vpop.permute.xlu0 %423
    %426 = vst.msk [vmem:[#allocation3 + $0x28] sm:$0xff] %vm120, %v424
    %v427 = vld [vmem:[#allocation2 + $0x30] sm:$0xff]
    %v428 = vsel %vm120, %v424, 0
    %430 = vmatpush.msra.mxu0 0.0
    %431 = vmatpush.msra.mxu0 0.0
    %432 = vmatpush.msra.mxu0 0.0
    %433 = vmatpush.msra.mxu0 0.0
    %434 = vmatpush.msra.mxu0 0.0
    %435 = vmatpush.msra.mxu0 0.0
    %436 = vmatpush.msra.mxu0 0.0
    %437 = vmatpush.msra.mxu0 0.0
    %438 = vmatpush.msra.mxu0 0.0
    %439 = vmatpush.msra.mxu0 0.0
    %440 = vmatpush.msra.mxu0 0.0
    %441 = vmatpush.msra.mxu0 0.0
    %442 = vmatpush.msra.mxu0 %v118
    %443 = vmatpush.msra.mxu0 %v117
    %444 = vmatpush.msra.mxu0 %v116
    %445 = vmatpush.msra.mxu0 %v115
    %446 = vmatmul.f32.gmra.mxu0 %v428
    %v447 = vpop.f32.mrf.mxu0
    %v448 = vadd.f32 0.0, %v447
    %449 = vdwg.mxu0
    %v450 = vadd.f32 %v427, %v448
    %v451 = vmul.f32 %v450, 0.5
    %v452 = vtanh.pop %v451
    %v453 = vadd.f32 %v452, 1.0
    %v454 = vmul.f32 %v453, 0.5
    %v455 = vtanh.pop %v450
    %v456 = vmul.f32 %v454, %v415
    %458 = vrot.lane.b32.xlu0 %v455, 64
    %v459 = vpop.permute.xlu0 %458
    %v461 = vmul.f32 %v454, %v459
    %463 = vrot.lane.b32.xlu0 %v461, 32
    %v464 = vpop.permute.xlu0 %463
    %v466 = vadd.f32 %v456, %v464
    %v467 = vtanh.pop %v466
    %469 = vrot.lane.b32.xlu0 %v467, 64
    %v470 = vpop.permute.xlu0 %469
    %v472 = vmul.f32 %v454, %v470
    %474 = vrot.lane.b32.xlu0 %v472, 32
    %v475 = vpop.permute.xlu0 %474
    %477 = vst.msk [vmem:[#allocation3 + $0x30] sm:$0xff] %vm120, %v475
    %v478 = vld [vmem:[#allocation2 + $0x38] sm:$0xff]
    %v479 = vsel %vm120, %v475, 0
    %481 = vmatpush.msra.mxu0 0.0
    %482 = vmatpush.msra.mxu0 0.0
    %483 = vmatpush.msra.mxu0 0.0
    %484 = vmatpush.msra.mxu0 0.0
    %485 = vmatpush.msra.mxu0 0.0
    %486 = vmatpush.msra.mxu0 0.0
    %487 = vmatpush.msra.mxu0 0.0
    %488 = vmatpush.msra.mxu0 0.0
    %489 = vmatpush.msra.mxu0 0.0
    %490 = vmatpush.msra.mxu0 0.0
    %491 = vmatpush.msra.mxu0 0.0
    %492 = vmatpush.msra.mxu0 0.0
    %493 = vmatpush.msra.mxu0 %v118
    %494 = vmatpush.msra.mxu0 %v117
    %495 = vmatpush.msra.mxu0 %v116
    %496 = vmatpush.msra.mxu0 %v115
    %497 = vmatmul.f32.gmra.mxu0 %v479
    %v498 = vpop.f32.mrf.mxu0
    %v499 = vadd.f32 0.0, %v498
    %500 = vdwg.mxu0
    %v501 = vadd.f32 %v478, %v499
    %v502 = vmul.f32 %v501, 0.5
    %v503 = vtanh.pop %v502
    %v504 = vadd.f32 %v503, 1.0
    %v505 = vmul.f32 %v504, 0.5
    %v506 = vtanh.pop %v501
    %v507 = vmul.f32 %v505, %v466
    %509 = vrot.lane.b32.xlu0 %v506, 64
    %v510 = vpop.permute.xlu0 %509
    %v512 = vmul.f32 %v505, %v510
    %514 = vrot.lane.b32.xlu0 %v512, 32
    %v515 = vpop.permute.xlu0 %514
    %v517 = vadd.f32 %v507, %v515
    %v518 = vtanh.pop %v517
    %520 = vrot.lane.b32.xlu0 %v518, 64
    %v521 = vpop.permute.xlu0 %520
    %v523 = vmul.f32 %v505, %v521
    %525 = vrot.lane.b32.xlu0 %v523, 32
    %v526 = vpop.permute.xlu0 %525
    %528 = vst.msk [vmem:[#allocation3 + $0x38] sm:$0xff] %vm120, %v526
    %v529 = vld [vmem:[#allocation3] sm:$0xff]
    %v530 = vld [vmem:[#allocation3 + $0x8] sm:$0xff]
    %v531 = vld [vmem:[#allocation3 + $0x10] sm:$0xff]
    %v532 = vld [vmem:[#allocation3 + $0x18] sm:$0xff]
    %v533 = vld [vmem:[#allocation3 + $0x20] sm:$0xff]
    %v534 = vld [vmem:[#allocation3 + $0x28] sm:$0xff]
    %v535 = vld [vmem:[#allocation3 + $0x30] sm:$0xff]
    %v536 = vld [vmem:[#allocation3 + $0x38] sm:$0xff]
    %v537 = vld [vmem:[%s4] sm:$0xff]
    %v538 = vld [vmem:[%s4 + $0x8] sm:$0xff]
    %v539 = vld [vmem:[%s4 + $0x10] sm:$0xff]
    %v540 = vld [vmem:[%s4 + $0x18] sm:$0xff]
    %v541 = vld [vmem:[%s5] sm:$0x1]
    %v543 = vperm.slane %v541, 0
    %v546 = vsel %vm120, %v529, 0
    %v549 = vsel %vm120, %v530, 0
    %v552 = vsel %vm120, %v531, 0
    %v555 = vsel %vm120, %v532, 0
    %v558 = vsel %vm120, %v533, 0
    %v561 = vsel %vm120, %v534, 0
    %v564 = vsel %vm120, %v535, 0
    %v567 = vsel %vm120, %v536, 0
    %569 = vmatpush.msra.mxu0 0.0
    %570 = vmatpush.msra.mxu0 0.0
    %571 = vmatpush.msra.mxu0 0.0
    %572 = vmatpush.msra.mxu0 0.0
    %573 = vmatpush.msra.mxu0 0.0
    %574 = vmatpush.msra.mxu0 0.0
    %575 = vmatpush.msra.mxu0 0.0
    %576 = vmatpush.msra.mxu0 0.0
    %577 = vmatpush.msra.mxu0 0.0
    %578 = vmatpush.msra.mxu0 0.0
    %579 = vmatpush.msra.mxu0 0.0
    %580 = vmatpush.msra.mxu0 0.0
    %581 = vmatpush.msra.mxu0 %v540
    %582 = vmatpush.msra.mxu0 %v539
    %583 = vmatpush.msra.mxu0 %v538
    %584 = vmatpush.msra.mxu0 %v537
    %585 = vmatmul.f32.gmra.mxu0 %v546
    %v586 = vpop.f32.mrf.mxu0
    %v587 = vadd.f32 %v543, %v586
    %588 = vmatmul.f32.gmra.mxu0 %v549
    %v589 = vpop.f32.mrf.mxu0
    %v590 = vadd.f32 %v543, %v589
    %591 = vmatmul.f32.gmra.mxu0 %v552
    %v592 = vpop.f32.mrf.mxu0
    %v593 = vadd.f32 %v543, %v592
    %594 = vmatmul.f32.gmra.mxu0 %v555
    %v595 = vpop.f32.mrf.mxu0
    %v596 = vadd.f32 %v543, %v595
    %597 = vmatmul.f32.gmra.mxu0 %v558
    %v598 = vpop.f32.mrf.mxu0
    %v599 = vadd.f32 %v543, %v598
    %600 = vmatmul.f32.gmra.mxu0 %v561
    %v601 = vpop.f32.mrf.mxu0
    %v602 = vadd.f32 %v543, %v601
    %603 = vmatmul.f32.gmra.mxu0 %v564
    %v604 = vpop.f32.mrf.mxu0
    %v605 = vadd.f32 %v543, %v604
    %606 = vmatmul.f32.gmra.mxu0 %v567
    %v607 = vpop.f32.mrf.mxu0
    %v608 = vadd.f32 %v543, %v607
    %609 = vdwg.mxu0
    %610 = vst [vmem:[#allocation4] sm:$0xff] %v587
    %611 = vst [vmem:[#allocation4 + $0x8] sm:$0xff] %v590
    %612 = vst [vmem:[#allocation4 + $0x10] sm:$0xff] %v593
    %613 = vst [vmem:[#allocation4 + $0x18] sm:$0xff] %v596
    %614 = vst [vmem:[#allocation4 + $0x20] sm:$0xff] %v599
    %615 = vst [vmem:[#allocation4 + $0x28] sm:$0xff] %v602
    %616 = vst [vmem:[#allocation4 + $0x30] sm:$0xff] %v605
    %617 = vst [vmem:[#allocation4 + $0x38] sm:$0xff] %v608
    // Predicated region
    $region26: #{tpu_custom_call.1} parent=1 // pred_check
      _
    $region27: #{tpu_custom_call.1} parent=1 // pred_check_branch
      %619 = sbr.rel (0) target = $region29
    $region28: #{tpu_custom_call.1} parent=1 // pred_region
      %621 = vsyncadd [#allocation5], 0
      %s622 = sshll.u32 [#allocation4], 4
      %s623 = int_to_ptr.vmem [resolvable:$true] %s622
      %s624 = sshll.u32 %s6, 4
      %s625 = int_to_ptr.hbm [resolvable:$true] %s624
      %630 = dma.vmem_to_hbm [thread:$0]  %s623, 1024, %s625, [#allocation5], 128, 128, 8
    $region29: #{tpu_custom_call.1} parent=1 // pred_fallthru
      _
    // Predicated region
    $region30: #{tpu_custom_call.1} parent=1 // pred_check
      _
    $region31: #{tpu_custom_call.1} parent=1 // pred_check_branch
      %632 = sbr.rel (0) target = $region33
    $region32: #{tpu_custom_call.1} parent=1 // pred_region
      %634 = dma.done [#allocation5], 1024
    $region33: #{tpu_custom_call.1} parent=1 // pred_fallthru
      _
    %635 = vsyncpa [#allocation5], 1

</llo_original>
